<compile_context>
chip_gen: v7x
topology: tpu7x:2x2x1
jax: 0.10.0
libtpu: 0.0.40
codegen_flags: <defaults>
</compile_context>

<pallas_src>
import jax
import jax.numpy as jnp
from jax.experimental import pallas as pl
from jax.experimental.pallas import tpu as pltpu


def _round_up(x: int, m: int) -> int:
    return ((x + m - 1) // m) * m


def rbm_fwd_kernel(v_ref, wt_ref, hb_ref, u_ref, prob_ref, samp_ref):
    # v_ref  : (TB, V) bf16  - batch tile of visible units (streamed)
    # wt_ref : (V, H)  bf16  - pre-transposed weights (resident across tiles)
    # hb_ref : (1, H)  f32   - hidden bias (resident)
    # u_ref  : (TB, H) f32   - uniform [0,1) randoms for Bernoulli sampling
    # h_linear = v @ W.T + h_bias  (here W^T is already (V, H)) -> MXU, f32 acc
    h_lin = jnp.dot(v_ref[...], wt_ref[...],
                    preferred_element_type=jnp.float32)
    h_lin = h_lin + hb_ref[...]              # broadcast (1, H) over batch tile

    # h_prob = sigmoid(h_linear)  (kept in f32: v5e has no bf16 VPU/EUP path)
    h_prob = jax.nn.sigmoid(h_lin)

    prob_ref[...] = h_prob
    # h_sample = bernoulli(h_prob):  sample = 1[u < p]
    samp_ref[...] = (u_ref[...] < h_prob).astype(jnp.float32)


def rbm_forward(v, W, h_bias, key):
    """Pallas equivalent of RBM.forward: returns (h_prob, h_sample)."""
    v = v.astype(jnp.float32)
    B, V = v.shape
    H = W.shape[0]

    # Wrapper-side layout plumbing (free under jit): transpose W once so the
    # matmul RHS is (K, N) oriented, and cast MXU inputs to bf16.
    wt = W.T.astype(jnp.bfloat16)                       # (V, H)
    hb = h_bias.reshape(1, H).astype(jnp.float32)       # (1, H)

    # Batch tile: multiple of 16 (bf16 sublane packing), capped at 128 MXU rows.
    TB = min(128, _round_up(B, 16))
    Bp = _round_up(B, TB)

    v_bf = v.astype(jnp.bfloat16)
    if Bp != B:
        v_bf = jnp.pad(v_bf, ((0, Bp - B), (0, 0)))

    # Uniform randoms for the Bernoulli draw, generated with jax.random so the
    # kernel stays portable (real TPU and interpret mode).
    u = jax.random.uniform(key, (Bp, H), dtype=jnp.float32)

    grid = (Bp // TB,)

    h_prob, h_sample = pl.pallas_call(
        rbm_fwd_kernel,
        out_shape=(
            jax.ShapeDtypeStruct((Bp, H), jnp.float32),
            jax.ShapeDtypeStruct((Bp, H), jnp.float32),
        ),
        grid_spec=pltpu.PrefetchScalarGridSpec(
            num_scalar_prefetch=0,
            grid=grid,
            in_specs=[
                pl.BlockSpec((TB, V), lambda i: (i, 0)),   # v tile (streamed)
                pl.BlockSpec((V, H), lambda i: (0, 0)),    # W^T (resident)
                pl.BlockSpec((1, H), lambda i: (0, 0)),    # h_bias (resident)
                pl.BlockSpec((TB, H), lambda i: (i, 0)),   # uniforms (streamed)
            ],
            out_specs=[
                pl.BlockSpec((TB, H), lambda i: (i, 0)),   # h_prob
                pl.BlockSpec((TB, H), lambda i: (i, 0)),   # h_sample
            ],
        ),
        compiler_params=pltpu.CompilerParams(
            dimension_semantics=("parallel",)),
    )(v_bf, wt, hb, u)

    if Bp != B:
        h_prob = h_prob[:B]
        h_sample = h_sample[:B]
    return h_prob, h_sample


if __name__ == "__main__":
    # Small, TPU-friendly shapes consistent with the module:
    # batch=8, num_visible=256, num_hidden=128.
    B, num_visible, num_hidden = 8, 256, 128

    key = jax.random.PRNGKey(0)
    k_w, k_v, k_u = jax.random.split(key, 3)

    # Deterministic parameter init mirroring __init__:
    #   W ~ randn(num_hidden, num_visible); biases = zeros.
    W = jax.random.normal(k_w, (num_hidden, num_visible), dtype=jnp.float32)
    h_bias = jnp.zeros((num_hidden,), dtype=jnp.float32)
    v_bias = jnp.zeros((num_visible,), dtype=jnp.float32)  # unused in forward

    v = jax.random.uniform(k_v, (B, num_visible), dtype=jnp.float32)

    h_prob, h_sample = rbm_forward(v, W, h_bias, key=k_u)
    jax.block_until_ready((h_prob, h_sample))

    # Sanity checks.
    assert h_prob.shape == (B, num_hidden)
    assert h_sample.shape == (B, num_hidden)

    # Reference with the same bf16 input casts (tight tolerance)...
    v_b = v.astype(jnp.bfloat16).astype(jnp.float32)
    W_b = W.astype(jnp.bfloat16).astype(jnp.float32)
    ref_prob_bf16 = jax.nn.sigmoid(v_b @ W_b.T + h_bias)
    assert jnp.allclose(h_prob, ref_prob_bf16, atol=1e-3), "bf16 ref mismatch"

    # ... and against the full-f32 reference (loose, bf16 matmul inputs).
    ref_prob_f32 = jax.nn.sigmoid(v @ W.T + h_bias)
    assert jnp.allclose(h_prob, ref_prob_f32, atol=3e-2), "f32 ref mismatch"

    # Probabilities in [0, 1]; samples are exactly 0/1.
    assert bool(jnp.all((h_prob >= 0.0) & (h_prob <= 1.0)))
    assert bool(jnp.all((h_sample == 0.0) | (h_sample == 1.0)))

    print("KERNEL_OK")
</pallas_src>

<mosaic_0001>
module attributes {stable_mosaic.version = 11 : i64} {
  func.func @rbm_fwd_kernel(%arg0: i32, %arg1: memref<16x256xbf16, #tpu.memory_space<vmem>>, %arg2: memref<256x128xbf16, #tpu.memory_space<vmem>>, %arg3: memref<1x128xf32, #tpu.memory_space<vmem>>, %arg4: memref<16x128xf32, #tpu.memory_space<vmem>>, %arg5: memref<16x128xf32, #tpu.memory_space<vmem>>, %arg6: memref<16x128xf32, #tpu.memory_space<vmem>>) attributes {dimension_semantics = [#tpu.dimension_semantics<parallel>], iteration_bounds = array<i64: 1>, scalar_prefetch = 0 : i64, scratch_operands = 0 : i64, tpu.core_type = #tpu.core_type<tc>, window_params = [{transform_indices = @transform_0, window_bounds = array<i64: 16, 256>}, {pipeline_mode = #tpu.pipeline_mode<synchronous>, transform_indices = @transform_1, window_bounds = array<i64: 256, 128>}, {pipeline_mode = #tpu.pipeline_mode<synchronous>, transform_indices = @transform_2, window_bounds = array<i64: 1, 128>}, {transform_indices = @transform_3, window_bounds = array<i64: 16, 128>}, {transform_indices = @transform_4, window_bounds = array<i64: 16, 128>}, {transform_indices = @transform_5, window_bounds = array<i64: 16, 128>}]} {
    %c0 = arith.constant 0 : index
    %c0_0 = arith.constant 0 : index
    %0 = vector.load %arg1[%c0, %c0_0] : memref<16x256xbf16, #tpu.memory_space<vmem>>, vector<16x256xbf16>
    %c0_1 = arith.constant 0 : index
    %c0_2 = arith.constant 0 : index
    %1 = vector.load %arg2[%c0_1, %c0_2] : memref<256x128xbf16, #tpu.memory_space<vmem>>, vector<256x128xbf16>
    %cst = arith.constant dense<0.000000e+00> : vector<16x128xf32>
    %2 = tpu.matmul %0, %1, %cst {dimension_numbers = #tpu.dot_dimension_numbers<[1], [0], [0], [1], [0, 0, 1, 1], [], []>} : vector<16x256xbf16>, vector<256x128xbf16>, vector<16x128xf32> -> vector<16x128xf32>
    %c0_3 = arith.constant 0 : index
    %c0_4 = arith.constant 0 : index
    %3 = vector.load %arg3[%c0_3, %c0_4] : memref<1x128xf32, #tpu.memory_space<vmem>>, vector<1x128xf32>
    %4 = vector.broadcast %3 : vector<1x128xf32> to vector<16x128xf32>
    %5 = arith.addf %2, %4 : vector<16x128xf32>
    %6 = arith.negf %5 : vector<16x128xf32>
    %7 = math.exp %6 : vector<16x128xf32>
    %cst_5 = arith.constant 1.000000e+00 : f32
    %8 = vector.broadcast %cst_5 : f32 to vector<16x128xf32>
    %9 = arith.addf %8, %7 : vector<16x128xf32>
    %10 = arith.divf %8, %9 : vector<16x128xf32>
    %c0_6 = arith.constant 0 : index
    %c0_7 = arith.constant 0 : index
    %11 = vector.load %arg5[%c0_6, %c0_7] : memref<16x128xf32, #tpu.memory_space<vmem>>, vector<16x128xf32>
    tpu.vector_store %arg5[%c0_6, %c0_7], %10 {strides = array<i32>} : memref<16x128xf32, #tpu.memory_space<vmem>>, vector<16x128xf32>,
    %c0_8 = arith.constant 0 : index
    %c0_9 = arith.constant 0 : index
    %12 = vector.load %arg4[%c0_8, %c0_9] : memref<16x128xf32, #tpu.memory_space<vmem>>, vector<16x128xf32>
    %13 = arith.cmpf olt, %12, %10 : vector<16x128xf32>
    %14 = arith.extui %13 : vector<16x128xi1> to vector<16x128xi32>
    %15 = arith.sitofp %14 : vector<16x128xi32> to vector<16x128xf32>
    %c0_10 = arith.constant 0 : index
    %c0_11 = arith.constant 0 : index
    %16 = vector.load %arg6[%c0_10, %c0_11] : memref<16x128xf32, #tpu.memory_space<vmem>>, vector<16x128xf32>
    tpu.vector_store %arg6[%c0_10, %c0_11], %15 {strides = array<i32>} : memref<16x128xf32, #tpu.memory_space<vmem>>, vector<16x128xf32>,
    return
  }
  func.func @transform_0(%arg0: i32) -> (i32, i32) {
    %c0_i32 = arith.constant 0 : i32
    %c0_i32_0 = arith.constant 0 : i32
    return %arg0, %c0_i32 : i32, i32
  }
  func.func @transform_1(%arg0: i32) -> (i32, i32) {
    %c0_i32 = arith.constant 0 : i32
    %c0_i32_0 = arith.constant 0 : i32
    %c0_i32_1 = arith.constant 0 : i32
    return %c0_i32, %c0_i32_0 : i32, i32
  }
  func.func @transform_2(%arg0: i32) -> (i32, i32) {
    %c0_i32 = arith.constant 0 : i32
    %c0_i32_0 = arith.constant 0 : i32
    %c0_i32_1 = arith.constant 0 : i32
    return %c0_i32, %c0_i32_0 : i32, i32
  }
  func.func @transform_3(%arg0: i32) -> (i32, i32) {
    %c0_i32 = arith.constant 0 : i32
    %c0_i32_0 = arith.constant 0 : i32
    return %arg0, %c0_i32 : i32, i32
  }
  func.func @transform_4(%arg0: i32) -> (i32, i32) {
    %c0_i32 = arith.constant 0 : i32
    %c0_i32_0 = arith.constant 0 : i32
    return %arg0, %c0_i32 : i32, i32
  }
  func.func @transform_5(%arg0: i32) -> (i32, i32) {
    %c0_i32 = arith.constant 0 : i32
    %c0_i32_0 = arith.constant 0 : i32
    return %arg0, %c0_i32 : i32, i32
  }
}

</mosaic_0001>

<llo_original>
// kernel: tpu_custom_call.1
$region0: #{tpu_custom_call.1}
  #allocation0 [shape = 'u32[]', space=smem, size = 0x4, offset = 0x4, fixed_abs, tag = 'smem constant byte address 0x4 - core index']
  #allocation1 [shape = 'u32[144,128]{1,0:T(1,128)}', space=vmem, size = 0x12000, scoped, tag = 'internal scratch']
  %s0 = inlined_call_operand.hbm [shape: bf16[16,256], index: 0, kind: input, shape index: {}]
  %s1 = inlined_call_operand.hbm [shape: bf16[256,128], index: 1, kind: input, shape index: {}]
  %s2 = inlined_call_operand.vmem [shape: f32[1,128], index: 2, kind: input, shape index: {}]
  %s3 = inlined_call_operand.hbm [shape: f32[16,128], index: 3, kind: input, shape index: {}]
  %s4 = inlined_call_operand.hbm [shape: f32[16,128], index: 4, kind: output, shape index: {0}]
  %s5 = inlined_call_operand.hbm [shape: f32[16,128], index: 5, kind: output, shape index: {1}]
  %6 = xla_tuple %s4, %s5
  %s7 = sld [smem:[#allocation0]]
  $region46: #{tpu_custom_call.1} parent=0
    _
  %s9 = ssub.s32 1, %s7
  %s10 = scalar_select 0, %s9, %s7
  $region1: #{tpu_custom_call.1} parent=0
    #allocation2 [shape = 'u8[8192]{0}', space=vmem, size = 0x2000, scoped, tag = 'input window, operand 0, single buffered']
    #allocation3 [shape = 's32[1]{0}', space=sflag, size = 0x4, scoped, tag = 'scoped memory for tpu_custom_call.1']
    #allocation4 [shape = 's32[1]{0}', space=sflag, size = 0x4, scoped, tag = 'scoped memory for tpu_custom_call.1']
    #allocation5 [shape = 'u8[65536]{0}', space=vmem, size = 0x10000, scoped, tag = 'input window, operand 1, single buffered']
    #allocation6 [shape = 's32[1]{0}', space=sflag, size = 0x4, scoped, tag = 'scoped memory for tpu_custom_call.1']
    #allocation7 [shape = 'u8[8192]{0}', space=vmem, size = 0x2000, scoped, tag = 'input window, operand 3, single buffered']
    #allocation8 [shape = 'u8[8192]{0}', space=vmem, size = 0x2000, scoped, tag = 'output window, operand 0, single buffered']
    #allocation9 [shape = 'u8[8192]{0}', space=vmem, size = 0x2000, scoped, tag = 'output window, operand 1, single buffered']
    #allocation10 [shape = 's32[1]{0}', space=sflag, size = 0x4, scoped, tag = 'scoped memory for tpu_custom_call.1']
    %11 = vsyncpa [#allocation3], 0
    %12 = vsyncpa [#allocation6], 0
    %13 = vsyncpa [#allocation4], 0
    %14 = vsyncpa [#allocation10], 0
    // Predicated region
    $region2: #{tpu_custom_call.1} parent=1 // pred_check
      _
    $region3: #{tpu_custom_call.1} parent=1 // pred_check_branch
      %16 = sbr.rel (0) target = $region5
    $region4: #{tpu_custom_call.1} parent=1 // pred_region
      %s18 = ssub.s32 256, 256
      %19 = vsyncadd [#allocation3], %s18
      %s20 = sshll.u32 [#allocation2], 4
      %s21 = int_to_ptr.vmem [resolvable:$true] %s20
      %26 = dma.hbm_to_vmem [thread:$0]  %s0, 256, %s21, [#allocation3], 128, 128, 8
    $region5: #{tpu_custom_call.1} parent=1 // pred_fallthru
      _
    // Predicated region
    $region6: #{tpu_custom_call.1} parent=1 // pred_check
      _
    $region7: #{tpu_custom_call.1} parent=1 // pred_check_branch
      %28 = sbr.rel (0) target = $region9
    $region8: #{tpu_custom_call.1} parent=1 // pred_region
      %s30 = ssub.s32 2048, 2048
      %31 = vsyncadd [#allocation6], %s30
      %s32 = sshll.u32 [#allocation5], 4
      %s33 = int_to_ptr.vmem [resolvable:$true] %s32
      %38 = dma.hbm_to_vmem [thread:$0]  %s1, 2048, %s33, [#allocation6], 64, 64, 4
    $region9: #{tpu_custom_call.1} parent=1 // pred_fallthru
      _
    // Predicated region
    $region10: #{tpu_custom_call.1} parent=1 // pred_check
      _
    $region11: #{tpu_custom_call.1} parent=1 // pred_check_branch
      %40 = sbr.rel (0) target = $region13
    $region12: #{tpu_custom_call.1} parent=1 // pred_region
      _
    $region13: #{tpu_custom_call.1} parent=1 // pred_fallthru
      _
    // Predicated region
    $region14: #{tpu_custom_call.1} parent=1 // pred_check
      _
    $region15: #{tpu_custom_call.1} parent=1 // pred_check_branch
      %42 = sbr.rel (0) target = $region17
    $region16: #{tpu_custom_call.1} parent=1 // pred_region
      %s44 = ssub.s32 256, 256
      %45 = vsyncadd [#allocation6], %s44
      %s46 = sshll.u32 [#allocation7], 4
      %s47 = int_to_ptr.vmem [resolvable:$true] %s46
      %52 = dma.hbm_to_vmem [thread:$0]  %s3, 256, %s47, [#allocation6], 128, 128, 8
    $region17: #{tpu_custom_call.1} parent=1 // pred_fallthru
      _
    // Predicated region
    $region18: #{tpu_custom_call.1} parent=1 // pred_check
      _
    $region19: #{tpu_custom_call.1} parent=1 // pred_check_branch
      %54 = sbr.rel (0) target = $region21
    $region20: #{tpu_custom_call.1} parent=1 // pred_region
      %55 = dma.done [#allocation3], 256
    $region21: #{tpu_custom_call.1} parent=1 // pred_fallthru
      _
    // Predicated region
    $region22: #{tpu_custom_call.1} parent=1 // pred_check
      _
    $region23: #{tpu_custom_call.1} parent=1 // pred_check_branch
      %57 = sbr.rel (0) target = $region25
    $region24: #{tpu_custom_call.1} parent=1 // pred_region
      %58 = dma.done [#allocation6], 2048
    $region25: #{tpu_custom_call.1} parent=1 // pred_fallthru
      _
    // Predicated region
    $region26: #{tpu_custom_call.1} parent=1 // pred_check
      _
    $region27: #{tpu_custom_call.1} parent=1 // pred_check_branch
      %60 = sbr.rel (0) target = $region29
    $region28: #{tpu_custom_call.1} parent=1 // pred_region
      %61 = dma.done [#allocation6], 256
    $region29: #{tpu_custom_call.1} parent=1 // pred_fallthru
      _
    %v63 = vld [vmem:[#allocation2] sm:$0xff]
    %v64 = vld [vmem:[#allocation2 + $0x8] sm:$0xff]
    %v65 = vld [vmem:[#allocation5] sm:$0xf]
    %v66 = vld [vmem:[#allocation5 + $0x4] sm:$0xf]
    %v67 = vld [vmem:[#allocation5 + $0x8] sm:$0xf]
    %v68 = vld [vmem:[#allocation5 + $0xc] sm:$0xf]
    %v69 = vld [vmem:[#allocation5 + $0x10] sm:$0xf]
    %v70 = vld [vmem:[#allocation5 + $0x14] sm:$0xf]
    %v71 = vld [vmem:[#allocation5 + $0x18] sm:$0xf]
    %v72 = vld [vmem:[#allocation5 + $0x1c] sm:$0xf]
    %v73 = vld [vmem:[#allocation5 + $0x20] sm:$0xf]
    %v74 = vld [vmem:[#allocation5 + $0x24] sm:$0xf]
    %v75 = vld [vmem:[#allocation5 + $0x28] sm:$0xf]
    %v76 = vld [vmem:[#allocation5 + $0x2c] sm:$0xf]
    %v77 = vld [vmem:[#allocation5 + $0x30] sm:$0xf]
    %v78 = vld [vmem:[#allocation5 + $0x34] sm:$0xf]
    %v79 = vld [vmem:[#allocation5 + $0x38] sm:$0xf]
    %v80 = vld [vmem:[#allocation5 + $0x3c] sm:$0xf]
    %v81 = vld [vmem:[#allocation5 + $0x40] sm:$0xf]
    %v82 = vld [vmem:[#allocation5 + $0x44] sm:$0xf]
    %v83 = vld [vmem:[#allocation5 + $0x48] sm:$0xf]
    %v84 = vld [vmem:[#allocation5 + $0x4c] sm:$0xf]
    %v85 = vld [vmem:[#allocation5 + $0x50] sm:$0xf]
    %v86 = vld [vmem:[#allocation5 + $0x54] sm:$0xf]
    %v87 = vld [vmem:[#allocation5 + $0x58] sm:$0xf]
    %v88 = vld [vmem:[#allocation5 + $0x5c] sm:$0xf]
    %v89 = vld [vmem:[#allocation5 + $0x60] sm:$0xf]
    %v90 = vld [vmem:[#allocation5 + $0x64] sm:$0xf]
    %v91 = vld [vmem:[#allocation5 + $0x68] sm:$0xf]
    %v92 = vld [vmem:[#allocation5 + $0x6c] sm:$0xf]
    %v93 = vld [vmem:[#allocation5 + $0x70] sm:$0xf]
    %v94 = vld [vmem:[#allocation5 + $0x74] sm:$0xf]
    %v95 = vld [vmem:[#allocation5 + $0x78] sm:$0xf]
    %v96 = vld [vmem:[#allocation5 + $0x7c] sm:$0xf]
    %v97 = vld [vmem:[%s2] sm:$0x1]
    %v99 = vlaneseq
    %v100 = vshrl.u32 %v99, 7
    %v101 = vsub.s32 0, %v100
    %v102 = vrot.slane %v97, %v101
    %v106 = vunpack.c.l.b16 %v63
    %v107 = vunpack.c.h.b16 %v63
    %v108 = vunpack.c.l.b16 %v64
    %v109 = vunpack.c.h.b16 %v64
    %v110 = vpack.c.b16 %v108, %v106
    %v111 = vpack.c.b16 %v109, %v107
    %v146 = vunpack.c.l.b16 %v65
    %v147 = vunpack.c.l.b16 %v66
    %v148 = vunpack.c.l.b16 %v67
    %v149 = vunpack.c.l.b16 %v68
    %v150 = vunpack.c.l.b16 %v69
    %v151 = vunpack.c.l.b16 %v70
    %v152 = vunpack.c.l.b16 %v71
    %v153 = vunpack.c.l.b16 %v72
    %v154 = vunpack.c.l.b16 %v73
    %v155 = vunpack.c.l.b16 %v74
    %v156 = vunpack.c.l.b16 %v75
    %v157 = vunpack.c.l.b16 %v76
    %v158 = vunpack.c.l.b16 %v77
    %v159 = vunpack.c.l.b16 %v78
    %v160 = vunpack.c.l.b16 %v79
    %v161 = vunpack.c.l.b16 %v80
    %v162 = vunpack.c.l.b16 %v81
    %v163 = vunpack.c.l.b16 %v82
    %v164 = vunpack.c.l.b16 %v83
    %v165 = vunpack.c.l.b16 %v84
    %v166 = vunpack.c.l.b16 %v85
    %v167 = vunpack.c.l.b16 %v86
    %v168 = vunpack.c.l.b16 %v87
    %v169 = vunpack.c.l.b16 %v88
    %v170 = vunpack.c.l.b16 %v89
    %v171 = vunpack.c.l.b16 %v90
    %v172 = vunpack.c.l.b16 %v91
    %v173 = vunpack.c.l.b16 %v92
    %v174 = vunpack.c.l.b16 %v93
    %v175 = vunpack.c.l.b16 %v94
    %v176 = vunpack.c.l.b16 %v95
    %v177 = vunpack.c.l.b16 %v96
    %v178 = vpack.c.b16 %v147, %v146
    %v179 = vpack.c.b16 %v149, %v148
    %v180 = vpack.c.b16 %v151, %v150
    %v181 = vpack.c.b16 %v153, %v152
    %v182 = vpack.c.b16 %v155, %v154
    %v183 = vpack.c.b16 %v157, %v156
    %v184 = vpack.c.b16 %v159, %v158
    %v185 = vpack.c.b16 %v161, %v160
    %v186 = vpack.c.b16 %v163, %v162
    %v187 = vpack.c.b16 %v165, %v164
    %v188 = vpack.c.b16 %v167, %v166
    %v189 = vpack.c.b16 %v169, %v168
    %v190 = vpack.c.b16 %v171, %v170
    %v191 = vpack.c.b16 %v173, %v172
    %v192 = vpack.c.b16 %v175, %v174
    %v193 = vpack.c.b16 %v177, %v176
    %210 = vmatprep.subr.bf16.mxu0 0
    %211 = vmatpush1.bf16.msra.mxu0 %v178
    %212 = vmatprep.subr.bf16.mxu0 0
    %213 = vmatpush1.bf16.msra.mxu0 %v179
    %214 = vmatprep.subr.bf16.mxu0 0
    %215 = vmatpush1.bf16.msra.mxu0 %v180
    %216 = vmatprep.subr.bf16.mxu0 0
    %217 = vmatpush1.bf16.msra.mxu0 %v181
    %218 = vmatprep.subr.bf16.mxu0 0
    %219 = vmatpush1.bf16.msra.mxu0 %v182
    %220 = vmatprep.subr.bf16.mxu0 0
    %221 = vmatpush1.bf16.msra.mxu0 %v183
    %222 = vmatprep.subr.bf16.mxu0 0
    %223 = vmatpush1.bf16.msra.mxu0 %v184
    %224 = vmatprep.subr.bf16.mxu0 0
    %225 = vmatpush1.bf16.msra.mxu0 %v185
    %226 = vmatprep.subr.bf16.mxu0 0
    %227 = vmatpush1.bf16.msra.mxu0 %v186
    %228 = vmatprep.subr.bf16.mxu0 0
    %229 = vmatpush1.bf16.msra.mxu0 %v187
    %230 = vmatprep.subr.bf16.mxu0 0
    %231 = vmatpush1.bf16.msra.mxu0 %v188
    %232 = vmatprep.subr.bf16.mxu0 0
    %233 = vmatpush1.bf16.msra.mxu0 %v189
    %234 = vmatprep.subr.bf16.mxu0 0
    %235 = vmatpush1.bf16.msra.mxu0 %v190
    %236 = vmatprep.subr.bf16.mxu0 0
    %237 = vmatpush1.bf16.msra.mxu0 %v191
    %238 = vmatprep.subr.bf16.mxu0 0
    %239 = vmatpush1.bf16.msra.mxu0 %v192
    %240 = vmatprep.subr.bf16.mxu0 0
    %241 = vmatpush1.bf16.msra.mxu0 %v193
    %242 = vmatprep.mubr.bf16.mxu0 %v111
    %243 = vmatmul.mubr.bf16.gmra.mrb[0].mxu0 %v110
    %v244 = vpop.f32.mrb[0].mxu0
    %v245 = vadd.f32 %v102, %v244
    %v246 = vpop.f32.mrb[0].mxu0
    %v247 = vpop.f32.mrb[0].mxu0
    %v248 = vadd.f32 %v102, %v247
    %v249 = vpop.f32.mrb[0].mxu0
    %250 = vdwg.mxu0
    %v251 = vxor.u32 %v245, 2147483648
    %v252 = vxor.u32 %v248, 2147483648
    %v253 = vmul.f32 %v251, 1.442695
    %v254 = vpow.pop %v253
    %v255 = vmul.f32 %v252, 1.442695
    %v256 = vpow.pop %v255
    %v257 = vadd.f32 %v254, 1.0
    %v258 = vadd.f32 %v256, 1.0
    %v259 = vrcp.pop %v257
    %v260 = vmul.f32 1.0, %v259
    %v261 = vrcp.pop %v258
    %v262 = vmul.f32 1.0, %v261
    %263 = vst [vmem:[#allocation8] sm:$0xff] %v260
    %264 = vst [vmem:[#allocation8 + $0x8] sm:$0xff] %v262
    %v265 = vld [vmem:[#allocation7] sm:$0xff]
    %v266 = vld [vmem:[#allocation7 + $0x8] sm:$0xff]
    %vm267 = vcmp.lt.f32.partialorder %v265, %v260
    %vm268 = vcmp.lt.f32.partialorder %v266, %v262
    %v269 = vsel %vm267, 1, 0
    %v270 = vsel %vm268, 1, 0
    %v271 = vcvt.s32.f32 %v269
    %v272 = vcvt.s32.f32 %v270
    %273 = vst [vmem:[#allocation9] sm:$0xff] %v271
    %274 = vst [vmem:[#allocation9 + $0x8] sm:$0xff] %v272
    // Predicated region
    $region30: #{tpu_custom_call.1} parent=1 // pred_check
      _
    $region31: #{tpu_custom_call.1} parent=1 // pred_check_branch
      %276 = sbr.rel (0) target = $region33
    $region32: #{tpu_custom_call.1} parent=1 // pred_region
      %s278 = ssub.s32 256, 256
      %279 = vsyncadd [#allocation4], %s278
      %s280 = sshll.u32 [#allocation8], 4
      %s281 = int_to_ptr.vmem [resolvable:$true] %s280
      %286 = dma.vmem_to_hbm [thread:$0]  %s281, 256, %s4, [#allocation4], 128, 128, 8
    $region33: #{tpu_custom_call.1} parent=1 // pred_fallthru
      _
    // Predicated region
    $region34: #{tpu_custom_call.1} parent=1 // pred_check
      _
    $region35: #{tpu_custom_call.1} parent=1 // pred_check_branch
      %288 = sbr.rel (0) target = $region37
    $region36: #{tpu_custom_call.1} parent=1 // pred_region
      %s290 = ssub.s32 256, 256
      %291 = vsyncadd [#allocation10], %s290
      %s292 = sshll.u32 [#allocation9], 4
      %s293 = int_to_ptr.vmem [resolvable:$true] %s292
      %298 = dma.vmem_to_hbm [thread:$0]  %s293, 256, %s5, [#allocation10], 128, 128, 8
    $region37: #{tpu_custom_call.1} parent=1 // pred_fallthru
      _
    // Predicated region
    $region38: #{tpu_custom_call.1} parent=1 // pred_check
      _
    $region39: #{tpu_custom_call.1} parent=1 // pred_check_branch
      %300 = sbr.rel (0) target = $region41
    $region40: #{tpu_custom_call.1} parent=1 // pred_region
      %301 = dma.done [#allocation4], 256
    $region41: #{tpu_custom_call.1} parent=1 // pred_fallthru
      _
    // Predicated region
    $region42: #{tpu_custom_call.1} parent=1 // pred_check
      _
    $region43: #{tpu_custom_call.1} parent=1 // pred_check_branch
      %303 = sbr.rel (0) target = $region45
    $region44: #{tpu_custom_call.1} parent=1 // pred_region
      %304 = dma.done [#allocation10], 256
    $region45: #{tpu_custom_call.1} parent=1 // pred_fallthru
      _
    %305 = vsyncpa [#allocation3], 1
    %306 = vsyncpa [#allocation6], 1
    %307 = vsyncpa [#allocation4], 1
    %308 = vsyncpa [#allocation10], 1

</llo_original>
